<compile_context>
chip_gen: v6e
topology: v6e:2x2x1
jax: 0.10.0
libtpu: 0.0.40
codegen_flags: <defaults>
</compile_context>

<pallas_src>
import jax
import jax.numpy as jnp
from jax.experimental import pallas as pl
from jax.experimental.pallas import tpu as pltpu


def _silu(v):
    return v * jax.nn.sigmoid(v)


def _round_up(n, m):
    return ((n + m - 1) // m) * m


def resnet1d_kernel(x_ref, w1_ref, b1_ref, w2_ref, b2_ref, o_ref):
    """Fused Resnet1D forward for one (Bb, T, Cp) tile.

    x_ref : (Bb, T, Cp)     activations, channel-last, lane-padded
    w1_ref: (D, Cp, 3*Sp)   conv1 weights, 3 taps stacked along N (f32 or bf16)
    b1_ref: (D, 1, Sp)      f32
    w2_ref: (D, Sp, Cp)     conv2 (1x1) weights (f32 or bf16)
    b2_ref: (D, 1, Cp)      f32
    o_ref : (Bb, T, Cp)
    """
    Bb, T, Cp = x_ref.shape
    D = w1_ref.shape[0]
    Sp = w2_ref.shape[1]
    M = Bb * T
    op_dtype = w1_ref.dtype            # MXU operand / activation compute dtype

    # Residual path stays f32; flatten batch*time into one large matmul M dimension.
    x = x_ref[...].astype(jnp.float32).reshape(M, Cp)

    # Per-row time index within each batch.  The conv taps are applied with 1-row sublane
    # rolls; the rows that wrap around (t==0 for the +1 roll, t==T-1 for the -1 roll, which
    # also covers batch-to-batch boundaries of the flattened M axis) are zeroed with these
    # precomputed (M,1) masks -- no per-depth concatenates / shifted copies.
    t_idx = jax.lax.broadcasted_iota(jnp.int32, (M, 1), 0) % T
    not_first = (t_idx != 0).astype(jnp.float32)
    not_last = (t_idx != T - 1).astype(jnp.float32)

    # n_depth is a small compile-time constant -> static unrolled loop.
    for d in range(D):
        # activation1 (norm1 = Identity), computed in op_dtype (bf16 halves EUP/VPU work
        # on v6e/v7x and feeds the MXU directly; f32 when exact numerics are required).
        sx = _silu(x.astype(op_dtype))

        # conv1 (k=3, pad=1): a single MXU push with N = 3*Sp, f32 accumulation.
        u = jnp.dot(sx, w1_ref[d], preferred_element_type=jnp.float32)   # (M, 3*Sp)
        u_km1 = u[:, 0 * Sp:1 * Sp]        # tap k=0 -> consumes x[t-1]
        u_k0 = u[:, 1 * Sp:2 * Sp]         # tap k=1 -> consumes x[t]
        u_kp1 = u[:, 2 * Sp:3 * Sp]        # tap k=2 -> consumes x[t+1]
        # 1-row time shifts through the XLU (pltpu.roll) instead of concatenate copies.
        h = (u_k0
             + pltpu.roll(u_km1, shift=1, axis=0) * not_first       # y[t] += u_km1[t-1]
             + pltpu.roll(u_kp1, shift=M - 1, axis=0) * not_last    # y[t] += u_kp1[t+1]
             + b1_ref[d])

        # activation2 (norm2 = Identity).
        hh = _silu(h.astype(op_dtype))

        # conv2 (1x1) == matmul + bias, then residual add (f32).
        x = jnp.dot(hh, w2_ref[d], preferred_element_type=jnp.float32) + b2_ref[d] + x

    o_ref[...] = x.reshape(Bb, T, Cp).astype(o_ref.dtype)


def _vmem_capacity_bytes():
    """Physical per-core VMEM; falls back to the smallest generation (v7x, 64 MiB)."""
    try:
        return int(pltpu.get_tpu_info().vmem_capacity_bytes)
    except Exception:
        return 64 * 2**20


def _choose_batch_block(B, T, Cp, Sp, D, w_bytes, vmem_budget, row_target=1024, max_bb=None):
    """Largest divisor Bb of B (<= max_bb) whose tile fits the VMEM budget."""
    if max_bb is None:
        max_bb = B
    best = 1
    for bb in range(1, max_bb + 1):
        if B % bb:
            continue
        rows = bb * T
        io_bytes = 2 * 2 * 4 * rows * Cp                   # x + out blocks, double-buffered
        tmp_bytes = 4 * rows * (3 * Sp + Sp + 2 * Cp)      # u / h / x / sx live temporaries
        if rows <= row_target and (w_bytes + io_bytes + tmp_bytes) <= vmem_budget:
            best = bb
    return best


def resnet1d_forward(x, emb, w1s, b1s, w2s, b2s, *, use_bf16=False):
    """Pallas Resnet1D forward.

    x  : (B, T, C) float32, channel-last (matches the permutes in the PyTorch forward)
    emb: unused (norm != 'AdaLN'), accepted for API parity
    w1s: (D, S, C, 3)  stacked PyTorch conv1 weights      b1s: (D, S)
    w2s: (D, C, S, 1)  stacked PyTorch conv2 weights      b2s: (D, C)
    use_bf16: feed the MXU (weights + activations) in bf16 with f32 accumulation
        (~4x MXU throughput, half the weight VMEM/DMA).  Keep False on v5e or when the
        strict f32 tolerance must hold.
    """
    del emb
    B, T, C = x.shape
    D, S = w1s.shape[0], w1s.shape[1]
    Cp = _round_up(C, 128)          # lane-dense channels (dense stores, full MXU K/N)
    Sp = _round_up(S, 128)
    op_dtype = jnp.bfloat16 if use_bf16 else jnp.float32
    w_itemsize = 2 if use_bf16 else 4
    # TODO(synk): for C,S << 128 the zero padding wastes MXU/EUP work (C=S=32 -> ~16x); if
    # small channel counts are a real deployment shape, pack several batches/time steps into
    # the lane dimension instead of zero-padding channels.

    # ---- weight / activation prep (plain JAX glue, done once for the whole stack) ----
    # conv1: (D,S,C,3) -> per-tap (C,S), zero-pad to (Cp,Sp), taps along N -> (D,Cp,3*Sp)
    w1t = jnp.transpose(w1s, (0, 3, 2, 1))                               # (D,3,C,S)
    w1t = jnp.pad(w1t, ((0, 0), (0, 0), (0, Cp - C), (0, Sp - S)))       # (D,3,Cp,Sp)
    w1cat = jnp.transpose(w1t, (0, 2, 1, 3)).reshape(D, Cp, 3 * Sp).astype(op_dtype)
    b1p = jnp.pad(b1s, ((0, 0), (0, Sp - S))).reshape(D, 1, Sp)          # f32
    # conv2: (D,C,S,1) -> (D,S,C) -> zero-pad -> (D,Sp,Cp)
    w2m = jnp.pad(jnp.transpose(w2s[..., 0], (0, 2, 1)),
                  ((0, 0), (0, Sp - S), (0, Cp - C))).astype(op_dtype)
    b2p = jnp.pad(b2s, ((0, 0), (0, Cp - C))).reshape(D, 1, Cp)          # f32
    # Lane padding of x skipped entirely when C is already lane-aligned (no extra HBM pass).
    xp = jnp.pad(x, ((0, 0), (0, 0), (0, Cp - C))) if Cp != C else x

    # ---- generation-aware tiling ----
    vmem_cap = _vmem_capacity_bytes()
    vmem_budget = int(0.75 * vmem_cap)
    w_bytes = (D * (Cp * 3 * Sp + Sp * Cp) * w_itemsize       # weights, single-buffered
               + D * (Sp + Cp) * 4)                           # biases (f32)
    # Keep the grid >= 2 so both v7x TensorCores get work and the input/output DMAs overlap
    # with compute on every generation.
    max_bb = max(1, B // 2)
    Bb = _choose_batch_block(B, T, Cp, Sp, D, w_bytes, vmem_budget, max_bb=max_bb)
    grid = (B // Bb,)
    # TODO(synk): for very long T / wide C even a Bb=1 tile can exceed the VMEM budget
    # (notably on v7x's 64 MiB); tile the time axis with a 1-row halo per side (manual
    # make_async_copy of the 2 halo rows).  Here each tile carries the full T of its
    # batches, so the 1-row conv shifts never cross a tile boundary.

    # ---- scoped-VMEM limit from the actual per-buffer accounting ----
    x_blk = 4 * Bb * T * Cp
    tmp = 4 * Bb * T * (3 * Sp + Sp + 2 * Cp)
    est = 2 * 2 * x_blk + w_bytes + tmp      # double-buffered in/out + weights + temporaries
    vmem_limit = int(min(int(0.9 * vmem_cap), max(16 * 2**20, est + est // 4)))

    flops = 2 * D * B * T * (Cp * 3 * Sp + Sp * Cp)
    transcendentals = D * B * T * (Cp + Sp)              # sigmoid exps
    bytes_accessed = (2 * 4 * B * T * Cp                 # x in + out
                      + D * (Cp * 3 * Sp + Sp * Cp) * w_itemsize
                      + D * (Sp + Cp) * 4)

    # Constant-index weight/bias specs: single buffer (no pointless double-buffering).
    weight_specs = [
        pl.BlockSpec((D, Cp, 3 * Sp), lambda i: (0, 0, 0), pipeline_mode=pl.Buffered(1)),
        pl.BlockSpec((D, 1, Sp), lambda i: (0, 0, 0), pipeline_mode=pl.Buffered(1)),
        pl.BlockSpec((D, Sp, Cp), lambda i: (0, 0, 0), pipeline_mode=pl.Buffered(1)),
        pl.BlockSpec((D, 1, Cp), lambda i: (0, 0, 0), pipeline_mode=pl.Buffered(1)),
    ]

    out = pl.pallas_call(
        resnet1d_kernel,
        out_shape=jax.ShapeDtypeStruct((B, T, Cp), x.dtype),
        grid_spec=pltpu.PrefetchScalarGridSpec(
            num_scalar_prefetch=0,
            grid=grid,
            in_specs=[pl.BlockSpec((Bb, T, Cp), lambda i: (i, 0, 0))] + weight_specs,
            out_specs=pl.BlockSpec((Bb, T, Cp), lambda i: (i, 0, 0)),
        ),
        compiler_params=pltpu.CompilerParams(
            dimension_semantics=("parallel",),
            vmem_limit_bytes=vmem_limit,
        ),
        cost_estimate=pl.CostEstimate(
            flops=flops,
            transcendentals=transcendentals,
            bytes_accessed=bytes_accessed,
        ),
    )(xp, w1cat, b1p, w2m, b2p)

    return out[..., :C] if Cp != C else out              # drop pad lanes only if padded


def resnet1d_ref(x, w1s, b1s, w2s, b2s):
    """Pure-JAX reference mirroring the PyTorch Resnet1D forward (norm=None, silu)."""
    B, T, C = x.shape
    D = w1s.shape[0]
    for d in range(D):
        x_orig = x
        h = _silu(x)
        hp = jnp.pad(h, ((0, 0), (1, 1), (0, 0)))
        y = b1s[d].reshape(1, 1, -1)
        for k in range(3):
            y = y + jnp.einsum("btc,sc->bts", hp[:, k:k + T, :], w1s[d, :, :, k])
        y = _silu(y)
        x = jnp.einsum("bts,cs->btc", y, w2s[d, :, :, 0]) + b2s[d].reshape(1, 1, -1) + x_orig
    return x


if __name__ == "__main__":
    B, T = 2, 16
    n_in, n_depth = 32, 2             # Resnet1D(n_in, n_depth): each block has n_state = n_in
    n_state = n_in

    key = jax.random.PRNGKey(0)
    keys = jax.random.split(key, 2 + 4 * n_depth)

    x = jax.random.normal(keys[0], (B, T, n_in), dtype=jnp.float32)
    emb = jax.random.normal(keys[1], (B, n_in), dtype=jnp.float32)    # unused (norm=None)

    w1s = jnp.stack([jax.random.normal(keys[2 + 4 * d + 0], (n_state, n_in, 3),
                                       dtype=jnp.float32) * 0.1 for d in range(n_depth)])
    b1s = jnp.stack([jax.random.normal(keys[2 + 4 * d + 1], (n_state,),
                                       dtype=jnp.float32) * 0.1 for d in range(n_depth)])
    w2s = jnp.stack([jax.random.normal(keys[2 + 4 * d + 2], (n_in, n_state, 1),
                                       dtype=jnp.float32) * 0.1 for d in range(n_depth)])
    b2s = jnp.stack([jax.random.normal(keys[2 + 4 * d + 3], (n_in,),
                                       dtype=jnp.float32) * 0.1 for d in range(n_depth)])

    ref = resnet1d_ref(x, w1s, b1s, w2s, b2s)

    # f32 MXU path: matches the PyTorch forward to tight tolerance.
    out = resnet1d_forward(x, emb, w1s, b1s, w2s, b2s)
    out = jax.block_until_ready(out)
    assert out.shape == (B, T, n_in)
    assert jnp.allclose(out, ref, rtol=1e-5, atol=1e-5), "f32 kernel mismatch vs reference"

    # bf16 MXU path (the fast path on v6e/v7x): same semantics, looser tolerance.
    out_bf16 = resnet1d_forward(x, emb, w1s, b1s, w2s, b2s, use_bf16=True)
    out_bf16 = jax.block_until_ready(out_bf16)
    assert out_bf16.shape == (B, T, n_in)
    assert jnp.allclose(out_bf16, ref, rtol=1e-1, atol=1e-1), "bf16 kernel mismatch vs reference"

    print("KERNEL_OK")
</pallas_src>

<mosaic_0001>
module attributes {stable_mosaic.version = 11 : i64} {
  func.func @resnet1d_kernel(%arg0: i32, %arg1: memref<1x16x128xf32, #tpu.memory_space<vmem>>, %arg2: memref<2x128x384xf32, #tpu.memory_space<vmem>>, %arg3: memref<2x1x128xf32, #tpu.memory_space<vmem>>, %arg4: memref<2x128x128xf32, #tpu.memory_space<vmem>>, %arg5: memref<2x1x128xf32, #tpu.memory_space<vmem>>, %arg6: memref<1x16x128xf32, #tpu.memory_space<vmem>>) attributes {dimension_semantics = [#tpu.dimension_semantics<parallel>], iteration_bounds = array<i64: 2>, scalar_prefetch = 0 : i64, scratch_operands = 0 : i64, tpu.core_type = #tpu.core_type<tc>, window_params = [{transform_indices = @transform_0, window_bounds = array<i64: 1, 16, 128>}, {pipeline_mode = #tpu.pipeline_mode<synchronous>, transform_indices = @transform_1, window_bounds = array<i64: 2, 128, 384>}, {pipeline_mode = #tpu.pipeline_mode<synchronous>, transform_indices = @transform_2, window_bounds = array<i64: 2, 1, 128>}, {pipeline_mode = #tpu.pipeline_mode<synchronous>, transform_indices = @transform_3, window_bounds = array<i64: 2, 128, 128>}, {pipeline_mode = #tpu.pipeline_mode<synchronous>, transform_indices = @transform_4, window_bounds = array<i64: 2, 1, 128>}, {transform_indices = @transform_5, window_bounds = array<i64: 1, 16, 128>}]} {
    %c0 = arith.constant 0 : index
    %c0_0 = arith.constant 0 : index
    %c0_1 = arith.constant 0 : index
    %0 = vector.load %arg1[%c0, %c0_0, %c0_1] : memref<1x16x128xf32, #tpu.memory_space<vmem>>, vector<1x16x128xf32>
    %1 = vector.shape_cast %0 : vector<1x16x128xf32> to vector<16x128xf32>
    %2 = tpu.iota {dimensions = array<i32: 0>} : vector<16x1xi32>
    %c16_i32 = arith.constant 16 : i32
    %c0_i32 = arith.constant 0 : i32
    %3 = arith.cmpi eq, %c16_i32, %c0_i32 : i32
    %c1_i32 = arith.constant 1 : i32
    %4 = arith.select %3, %c1_i32, %c16_i32 : i32
    %5 = vector.broadcast %4 : i32 to vector<16x1xi32>
    %6 = arith.remsi %2, %5 : vector<16x1xi32>
    %c0_i32_2 = arith.constant 0 : i32
    %7 = vector.broadcast %c0_i32_2 : i32 to vector<16x1xi32>
    %8 = arith.cmpi ne, %6, %7 : vector<16x1xi32>
    %c0_i32_3 = arith.constant 0 : i32
    %9 = vector.broadcast %c0_i32_3 : i32 to vector<16x1xi32>
    %10 = arith.cmpi slt, %6, %9 : vector<16x1xi32>
    %c0_i32_4 = arith.constant 0 : i32
    %11 = arith.cmpi slt, %4, %c0_i32_4 : i32
    %12 = vector.broadcast %11 : i1 to vector<16x1xi1>
    %13 = vector.broadcast %12 : vector<16x1xi1> to vector<16x1xi1>
    %14 = arith.xori %10, %13 : vector<16x1xi1>
    %15 = arith.andi %14, %8 : vector<16x1xi1>
    %16 = vector.broadcast %4 : i32 to vector<16x1xi32>
    %17 = arith.addi %6, %16 : vector<16x1xi32>
    %18 = arith.select %15, %17, %6 : vector<16x1xi1>, vector<16x1xi32>
    %c0_i32_5 = arith.constant 0 : i32
    %19 = vector.broadcast %c0_i32_5 : i32 to vector<16x1xi32>
    %20 = arith.cmpi ne, %18, %19 : vector<16x1xi32>
    %21 = arith.extui %20 : vector<16x1xi1> to vector<16x1xi32>
    %22 = arith.sitofp %21 : vector<16x1xi32> to vector<16x1xf32>
    %c15_i32 = arith.constant 15 : i32
    %23 = vector.broadcast %c15_i32 : i32 to vector<16x1xi32>
    %24 = arith.cmpi ne, %18, %23 : vector<16x1xi32>
    %25 = arith.extui %24 : vector<16x1xi1> to vector<16x1xi32>
    %26 = arith.sitofp %25 : vector<16x1xi32> to vector<16x1xf32>
    %27 = arith.negf %1 : vector<16x128xf32>
    %28 = math.exp %27 : vector<16x128xf32>
    %cst = arith.constant 1.000000e+00 : f32
    %29 = vector.broadcast %cst : f32 to vector<16x128xf32>
    %30 = arith.addf %29, %28 : vector<16x128xf32>
    %31 = arith.divf %29, %30 : vector<16x128xf32>
    %32 = arith.mulf %1, %31 : vector<16x128xf32>
    %c0_6 = arith.constant 0 : index
    %c0_7 = arith.constant 0 : index
    %c0_8 = arith.constant 0 : index
    %33 = vector.load %arg2[%c0_6, %c0_7, %c0_8] : memref<2x128x384xf32, #tpu.memory_space<vmem>>, vector<1x128x384xf32>
    %34 = vector.shape_cast %33 : vector<1x128x384xf32> to vector<128x384xf32>
    %cst_9 = arith.constant dense<0.000000e+00> : vector<16x384xf32>
    %35 = tpu.matmul %32, %34, %cst_9 {dimension_numbers = #tpu.dot_dimension_numbers<[1], [0], [0], [1], [0, 0, 1, 1], [], []>} : vector<16x128xf32>, vector<128x384xf32>, vector<16x384xf32> -> vector<16x384xf32>
    %36 = vector.extract_strided_slice %35 {offsets = [0, 0], sizes = [16, 128], strides = [1, 1]} : vector<16x384xf32> to vector<16x128xf32>
    %37 = vector.extract_strided_slice %35 {offsets = [0, 128], sizes = [16, 128], strides = [1, 1]} : vector<16x384xf32> to vector<16x128xf32>
    %38 = vector.extract_strided_slice %35 {offsets = [0, 256], sizes = [16, 128], strides = [1, 1]} : vector<16x384xf32> to vector<16x128xf32>
    %c1_i32_10 = arith.constant 1 : i32
    %39 = tpu.dynamic_rotate %36 by %c1_i32_10 dim 0 : vector<16x128xf32>, i32 -> vector<16x128xf32>
    %40 = vector.broadcast %22 : vector<16x1xf32> to vector<16x128xf32>
    %41 = arith.mulf %39, %40 : vector<16x128xf32>
    %42 = arith.addf %37, %41 : vector<16x128xf32>
    %c15_i32_11 = arith.constant 15 : i32
    %43 = tpu.dynamic_rotate %38 by %c15_i32_11 dim 0 : vector<16x128xf32>, i32 -> vector<16x128xf32>
    %44 = vector.broadcast %26 : vector<16x1xf32> to vector<16x128xf32>
    %45 = arith.mulf %43, %44 : vector<16x128xf32>
    %46 = arith.addf %42, %45 : vector<16x128xf32>
    %c0_12 = arith.constant 0 : index
    %c0_13 = arith.constant 0 : index
    %c0_14 = arith.constant 0 : index
    %47 = vector.load %arg3[%c0_12, %c0_13, %c0_14] : memref<2x1x128xf32, #tpu.memory_space<vmem>>, vector<1x1x128xf32>
    %48 = vector.shape_cast %47 : vector<1x1x128xf32> to vector<1x128xf32>
    %49 = vector.broadcast %48 : vector<1x128xf32> to vector<16x128xf32>
    %50 = arith.addf %46, %49 : vector<16x128xf32>
    %51 = arith.negf %50 : vector<16x128xf32>
    %52 = math.exp %51 : vector<16x128xf32>
    %cst_15 = arith.constant 1.000000e+00 : f32
    %53 = vector.broadcast %cst_15 : f32 to vector<16x128xf32>
    %54 = arith.addf %53, %52 : vector<16x128xf32>
    %55 = arith.divf %53, %54 : vector<16x128xf32>
    %56 = arith.mulf %50, %55 : vector<16x128xf32>
    %c0_16 = arith.constant 0 : index
    %c0_17 = arith.constant 0 : index
    %c0_18 = arith.constant 0 : index
    %57 = vector.load %arg4[%c0_16, %c0_17, %c0_18] : memref<2x128x128xf32, #tpu.memory_space<vmem>>, vector<1x128x128xf32>
    %58 = vector.shape_cast %57 : vector<1x128x128xf32> to vector<128x128xf32>
    %cst_19 = arith.constant dense<0.000000e+00> : vector<16x128xf32>
    %59 = tpu.matmul %56, %58, %cst_19 {dimension_numbers = #tpu.dot_dimension_numbers<[1], [0], [0], [1], [0, 0, 1, 1], [], []>} : vector<16x128xf32>, vector<128x128xf32>, vector<16x128xf32> -> vector<16x128xf32>
    %c0_20 = arith.constant 0 : index
    %c0_21 = arith.constant 0 : index
    %c0_22 = arith.constant 0 : index
    %60 = vector.load %arg5[%c0_20, %c0_21, %c0_22] : memref<2x1x128xf32, #tpu.memory_space<vmem>>, vector<1x1x128xf32>
    %61 = vector.shape_cast %60 : vector<1x1x128xf32> to vector<1x128xf32>
    %62 = vector.broadcast %61 : vector<1x128xf32> to vector<16x128xf32>
    %63 = arith.addf %59, %62 : vector<16x128xf32>
    %64 = arith.addf %63, %1 : vector<16x128xf32>
    %65 = arith.negf %64 : vector<16x128xf32>
    %66 = math.exp %65 : vector<16x128xf32>
    %cst_23 = arith.constant 1.000000e+00 : f32
    %67 = vector.broadcast %cst_23 : f32 to vector<16x128xf32>
    %68 = arith.addf %67, %66 : vector<16x128xf32>
    %69 = arith.divf %67, %68 : vector<16x128xf32>
    %70 = arith.mulf %64, %69 : vector<16x128xf32>
    %c1 = arith.constant 1 : index
    %c0_24 = arith.constant 0 : index
    %c0_25 = arith.constant 0 : index
    %71 = vector.load %arg2[%c1, %c0_24, %c0_25] : memref<2x128x384xf32, #tpu.memory_space<vmem>>, vector<1x128x384xf32>
    %72 = vector.shape_cast %71 : vector<1x128x384xf32> to vector<128x384xf32>
    %cst_26 = arith.constant dense<0.000000e+00> : vector<16x384xf32>
    %73 = tpu.matmul %70, %72, %cst_26 {dimension_numbers = #tpu.dot_dimension_numbers<[1], [0], [0], [1], [0, 0, 1, 1], [], []>} : vector<16x128xf32>, vector<128x384xf32>, vector<16x384xf32> -> vector<16x384xf32>
    %74 = vector.extract_strided_slice %73 {offsets = [0, 0], sizes = [16, 128], strides = [1, 1]} : vector<16x384xf32> to vector<16x128xf32>
    %75 = vector.extract_strided_slice %73 {offsets = [0, 128], sizes = [16, 128], strides = [1, 1]} : vector<16x384xf32> to vector<16x128xf32>
    %76 = vector.extract_strided_slice %73 {offsets = [0, 256], sizes = [16, 128], strides = [1, 1]} : vector<16x384xf32> to vector<16x128xf32>
    %c1_i32_27 = arith.constant 1 : i32
    %77 = tpu.dynamic_rotate %74 by %c1_i32_27 dim 0 : vector<16x128xf32>, i32 -> vector<16x128xf32>
    %78 = vector.broadcast %22 : vector<16x1xf32> to vector<16x128xf32>
    %79 = arith.mulf %77, %78 : vector<16x128xf32>
    %80 = arith.addf %75, %79 : vector<16x128xf32>
    %c15_i32_28 = arith.constant 15 : i32
    %81 = tpu.dynamic_rotate %76 by %c15_i32_28 dim 0 : vector<16x128xf32>, i32 -> vector<16x128xf32>
    %82 = vector.broadcast %26 : vector<16x1xf32> to vector<16x128xf32>
    %83 = arith.mulf %81, %82 : vector<16x128xf32>
    %84 = arith.addf %80, %83 : vector<16x128xf32>
    %c1_29 = arith.constant 1 : index
    %c0_30 = arith.constant 0 : index
    %c0_31 = arith.constant 0 : index
    %85 = vector.load %arg3[%c1_29, %c0_30, %c0_31] : memref<2x1x128xf32, #tpu.memory_space<vmem>>, vector<1x1x128xf32>
    %86 = vector.shape_cast %85 : vector<1x1x128xf32> to vector<1x128xf32>
    %87 = vector.broadcast %86 : vector<1x128xf32> to vector<16x128xf32>
    %88 = arith.addf %84, %87 : vector<16x128xf32>
    %89 = arith.negf %88 : vector<16x128xf32>
    %90 = math.exp %89 : vector<16x128xf32>
    %cst_32 = arith.constant 1.000000e+00 : f32
    %91 = vector.broadcast %cst_32 : f32 to vector<16x128xf32>
    %92 = arith.addf %91, %90 : vector<16x128xf32>
    %93 = arith.divf %91, %92 : vector<16x128xf32>
    %94 = arith.mulf %88, %93 : vector<16x128xf32>
    %c1_33 = arith.constant 1 : index
    %c0_34 = arith.constant 0 : index
    %c0_35 = arith.constant 0 : index
    %95 = vector.load %arg4[%c1_33, %c0_34, %c0_35] : memref<2x128x128xf32, #tpu.memory_space<vmem>>, vector<1x128x128xf32>
    %96 = vector.shape_cast %95 : vector<1x128x128xf32> to vector<128x128xf32>
    %cst_36 = arith.constant dense<0.000000e+00> : vector<16x128xf32>
    %97 = tpu.matmul %94, %96, %cst_36 {dimension_numbers = #tpu.dot_dimension_numbers<[1], [0], [0], [1], [0, 0, 1, 1], [], []>} : vector<16x128xf32>, vector<128x128xf32>, vector<16x128xf32> -> vector<16x128xf32>
    %c1_37 = arith.constant 1 : index
    %c0_38 = arith.constant 0 : index
    %c0_39 = arith.constant 0 : index
    %98 = vector.load %arg5[%c1_37, %c0_38, %c0_39] : memref<2x1x128xf32, #tpu.memory_space<vmem>>, vector<1x1x128xf32>
    %99 = vector.shape_cast %98 : vector<1x1x128xf32> to vector<1x128xf32>
    %100 = vector.broadcast %99 : vector<1x128xf32> to vector<16x128xf32>
    %101 = arith.addf %97, %100 : vector<16x128xf32>
    %102 = arith.addf %101, %64 : vector<16x128xf32>
    %103 = vector.shape_cast %102 : vector<16x128xf32> to vector<1x16x128xf32>
    %c0_40 = arith.constant 0 : index
    %c0_41 = arith.constant 0 : index
    %c0_42 = arith.constant 0 : index
    %104 = vector.load %arg6[%c0_40, %c0_41, %c0_42] : memref<1x16x128xf32, #tpu.memory_space<vmem>>, vector<1x16x128xf32>
    tpu.vector_store %arg6[%c0_40, %c0_41, %c0_42], %103 {strides = array<i32>} : memref<1x16x128xf32, #tpu.memory_space<vmem>>, vector<1x16x128xf32>,
    return
  }
  func.func @transform_0(%arg0: i32) -> (i32, i32, i32) {
    %c0_i32 = arith.constant 0 : i32
    %c0_i32_0 = arith.constant 0 : i32
    %c0_i32_1 = arith.constant 0 : i32
    return %arg0, %c0_i32, %c0_i32_0 : i32, i32, i32
  }
  func.func @transform_1(%arg0: i32) -> (i32, i32, i32) {
    %c0_i32 = arith.constant 0 : i32
    %c0_i32_0 = arith.constant 0 : i32
    %c0_i32_1 = arith.constant 0 : i32
    %c0_i32_2 = arith.constant 0 : i32
    return %c0_i32, %c0_i32_0, %c0_i32_1 : i32, i32, i32
  }
  func.func @transform_2(%arg0: i32) -> (i32, i32, i32) {
    %c0_i32 = arith.constant 0 : i32
    %c0_i32_0 = arith.constant 0 : i32
    %c0_i32_1 = arith.constant 0 : i32
    %c0_i32_2 = arith.constant 0 : i32
    return %c0_i32, %c0_i32_0, %c0_i32_1 : i32, i32, i32
  }
  func.func @transform_3(%arg0: i32) -> (i32, i32, i32) {
    %c0_i32 = arith.constant 0 : i32
    %c0_i32_0 = arith.constant 0 : i32
    %c0_i32_1 = arith.constant 0 : i32
    %c0_i32_2 = arith.constant 0 : i32
    return %c0_i32, %c0_i32_0, %c0_i32_1 : i32, i32, i32
  }
  func.func @transform_4(%arg0: i32) -> (i32, i32, i32) {
    %c0_i32 = arith.constant 0 : i32
    %c0_i32_0 = arith.constant 0 : i32
    %c0_i32_1 = arith.constant 0 : i32
    %c0_i32_2 = arith.constant 0 : i32
    return %c0_i32, %c0_i32_0, %c0_i32_1 : i32, i32, i32
  }
  func.func @transform_5(%arg0: i32) -> (i32, i32, i32) {
    %c0_i32 = arith.constant 0 : i32
    %c0_i32_0 = arith.constant 0 : i32
    %c0_i32_1 = arith.constant 0 : i32
    return %arg0, %c0_i32, %c0_i32_0 : i32, i32, i32
  }
}

</mosaic_0001>

<llo_original>
// kernel: tpu_custom_call.1
$region0: #{tpu_custom_call.1}
  #allocation0 [shape = 'u32[]', space=smem, size = 0x4, offset = 0x4, fixed_abs, tag = 'smem constant byte address 0x4 - core index']
  #allocation1 [shape = 'u32[144,128]{1,0:T(1,128)}', space=vmem, size = 0x12000, scoped, tag = 'internal scratch']
  %s0 = inlined_call_operand.hbm [shape: f32[2,16,128], index: 0, kind: input, shape index: {}]
  %s1 = inlined_call_operand.hbm [shape: f32[2,128,384], index: 1, kind: input, shape index: {}]
  %s2 = inlined_call_operand.vmem [shape: f32[2,1,128], index: 2, kind: input, shape index: {}]
  %s3 = inlined_call_operand.hbm [shape: f32[2,128,128], index: 3, kind: input, shape index: {}]
  %s4 = inlined_call_operand.vmem [shape: f32[2,1,128], index: 4, kind: input, shape index: {}]
  %s5 = inlined_call_operand.hbm [shape: f32[2,16,128], index: 5, kind: output, shape index: {}]
  %s6 = sld [smem:[#allocation0]]
  $region65: #{tpu_custom_call.1} parent=0
    _
  %s8 = ssub.s32 1, %s6
  %s9 = scalar_select 0, %s8, %s6
  $region1: #{tpu_custom_call.1} parent=0
    #allocation2 [shape = 'u8[16384]{0}', space=vmem, size = 0x4000, scoped, tag = 'input window, operand 0']
    #allocation3 [shape = 's32[2]{0}', space=sflag, size = 0x8, scoped, tag = 'scoped memory for tpu_custom_call.1']
    #allocation4 [shape = 's32[2]{0}', space=sflag, size = 0x8, scoped, tag = 'scoped memory for tpu_custom_call.1']
    #allocation5 [shape = 'u8[393216]{0}', space=vmem, size = 0x60000, scoped, tag = 'input window, operand 1, single buffered']
    #allocation6 [shape = 's32[1]{0}', space=sflag, size = 0x4, scoped, tag = 'scoped memory for tpu_custom_call.1']
    #allocation7 [shape = 'u8[131072]{0}', space=vmem, size = 0x20000, scoped, tag = 'input window, operand 3, single buffered']
    #allocation8 [shape = 'u8[16384]{0}', space=vmem, size = 0x4000, scoped, tag = 'output window, operand 0']
    %10 = vsyncpa [#allocation3], 0
    %s11 = scalar_lea.sflag [#allocation3], 1
    %12 = vsyncpa %s11, 0
    %13 = vsyncpa [#allocation6], 0
    %14 = vsyncpa [#allocation4], 0
    %s15 = scalar_lea.sflag [#allocation4], 1
    %16 = vsyncpa %s15, 0
    loop: start=0, step=1, limit=4
    $region2: #{tpu_custom_call.1} parent=1 // loop_pre_header
      _
    $region3: #{tpu_custom_call.1} parent=1 // loop_header
      %s18 = sphi 0, %s22
      %p19 = scmp.ge.s32.totalorder %s18, 4
      %s28 = sphi 0, %s30
      %s31 = sphi 0, %s28
      %s32 = sphi 0, %s31
      %s48 = sphi 0, %s32
      %s52 = sphi 0, %s52
      %s54 = sphi 0, %s52
      %s55 = sphi 0, %s54
      %s69 = sphi 0, %s55
      %s73 = sphi 0, %s73
      %s75 = sphi 0, %s73
      %s76 = sphi 0, %s75
      %s90 = sphi 0, %s76
      %s94 = sphi 0, %s94
      %s96 = sphi 0, %s94
      %s97 = sphi 0, %s96
      %s111 = sphi 0, %s97
      %s115 = sphi 0, %s115
      %s117 = sphi 0, %s115
      %s118 = sphi 0, %s117
      %s132 = sphi 0, %s118
      %s138 = sphi 0, %s140
      %s141 = sphi 0, %s138
      %s142 = sphi 0, %s141
      %s158 = sphi 0, %s142
    $region4: #{tpu_custom_call.1} parent=1 // loop_header_branch
      %21 = sbr.rel (%p19) target = $region8
    $region5: #{tpu_custom_call.1} parent=1 // loop_body
      %s23 = ssub.s32 %s18, 1
      %s24 = ssub.s32 %s18, 2
      %s25 = sadd.s32 %s18, 1
      %s26 = ssub.s32 %s18, %s25
      %p27 = scmp.eq.s32.totalorder %s26, 0
      %s29 = sadd.s32 %s28, 1
      %s30 = scalar_select %p27, %s28, %s29
      %p33 = pneg %p27
      %p34 = scmp.eq.s32.totalorder %s18, 1
      %p35 = por %p33, %p34
      %p36 = scmp.ne.s32.totalorder %s28, %s31
      %p37 = scmp.eq.s32.totalorder %s18, 0
      %p38 = por %p36, %p37
      %p39 = scmp.ne.s32.totalorder %s28, %s31
      %p40 = scmp.eq.s32.totalorder %s23, 1
      %p41 = por %p39, %p40
      %p42 = scmp.ne.s32.totalorder %s31, %s32
      %p43 = scmp.eq.s32.totalorder %s23, 0
      %p44 = por %p42, %p43
      %p45 = scmp.ne.s32.totalorder %s31, %s32
      %p46 = scmp.eq.s32.totalorder %s24, 1
      %p47 = por %p45, %p46
      %p49 = scmp.ne.s32.totalorder %s32, %s48
      %p50 = scmp.eq.s32.totalorder %s24, 0
      %p51 = por %p49, %p50
      %s53 = sadd.s32 %s52, 1
      %p56 = scmp.eq.s32.totalorder %s18, 1
      %p57 = scmp.ne.s32.totalorder %s52, %s54
      %p58 = scmp.eq.s32.totalorder %s18, 0
      %p59 = por %p57, %p58
      %p60 = scmp.ne.s32.totalorder %s52, %s54
      %p61 = scmp.eq.s32.totalorder %s23, 1
      %p62 = por %p60, %p61
      %p63 = scmp.ne.s32.totalorder %s54, %s55
      %p64 = scmp.eq.s32.totalorder %s23, 0
      %p65 = por %p63, %p64
      %p66 = scmp.ne.s32.totalorder %s54, %s55
      %p67 = scmp.eq.s32.totalorder %s24, 1
      %p68 = por %p66, %p67
      %p70 = scmp.ne.s32.totalorder %s55, %s69
      %p71 = scmp.eq.s32.totalorder %s24, 0
      %p72 = por %p70, %p71
      %s74 = sadd.s32 %s73, 1
      %p77 = scmp.eq.s32.totalorder %s18, 1
      %p78 = scmp.ne.s32.totalorder %s73, %s75
      %p79 = scmp.eq.s32.totalorder %s18, 0
      %p80 = por %p78, %p79
      %p81 = scmp.ne.s32.totalorder %s73, %s75
      %p82 = scmp.eq.s32.totalorder %s23, 1
      %p83 = por %p81, %p82
      %p84 = scmp.ne.s32.totalorder %s75, %s76
      %p85 = scmp.eq.s32.totalorder %s23, 0
      %p86 = por %p84, %p85
      %p87 = scmp.ne.s32.totalorder %s75, %s76
      %p88 = scmp.eq.s32.totalorder %s24, 1
      %p89 = por %p87, %p88
      %p91 = scmp.ne.s32.totalorder %s76, %s90
      %p92 = scmp.eq.s32.totalorder %s24, 0
      %p93 = por %p91, %p92
      %s95 = sadd.s32 %s94, 1
      %p98 = scmp.eq.s32.totalorder %s18, 1
      %p99 = scmp.ne.s32.totalorder %s94, %s96
      %p100 = scmp.eq.s32.totalorder %s18, 0
      %p101 = por %p99, %p100
      %p102 = scmp.ne.s32.totalorder %s94, %s96
      %p103 = scmp.eq.s32.totalorder %s23, 1
      %p104 = por %p102, %p103
      %p105 = scmp.ne.s32.totalorder %s96, %s97
      %p106 = scmp.eq.s32.totalorder %s23, 0
      %p107 = por %p105, %p106
      %p108 = scmp.ne.s32.totalorder %s96, %s97
      %p109 = scmp.eq.s32.totalorder %s24, 1
      %p110 = por %p108, %p109
      %p112 = scmp.ne.s32.totalorder %s97, %s111
      %p113 = scmp.eq.s32.totalorder %s24, 0
      %p114 = por %p112, %p113
      %s116 = sadd.s32 %s115, 1
      %p119 = scmp.eq.s32.totalorder %s18, 1
      %p120 = scmp.ne.s32.totalorder %s115, %s117
      %p121 = scmp.eq.s32.totalorder %s18, 0
      %p122 = por %p120, %p121
      %p123 = scmp.ne.s32.totalorder %s115, %s117
      %p124 = scmp.eq.s32.totalorder %s23, 1
      %p125 = por %p123, %p124
      %p126 = scmp.ne.s32.totalorder %s117, %s118
      %p127 = scmp.eq.s32.totalorder %s23, 0
      %p128 = por %p126, %p127
      %p129 = scmp.ne.s32.totalorder %s117, %s118
      %p130 = scmp.eq.s32.totalorder %s24, 1
      %p131 = por %p129, %p130
      %p133 = scmp.ne.s32.totalorder %s118, %s132
      %p134 = scmp.eq.s32.totalorder %s24, 0
      %p135 = por %p133, %p134
      %s136 = ssub.s32 %s18, %s25
      %p137 = scmp.eq.s32.totalorder %s136, 0
      %s139 = sadd.s32 %s138, 1
      %s140 = scalar_select %p137, %s138, %s139
      %p143 = pneg %p137
      %p144 = scmp.eq.s32.totalorder %s18, 1
      %p145 = por %p143, %p144
      %p146 = scmp.ne.s32.totalorder %s138, %s141
      %p147 = scmp.eq.s32.totalorder %s18, 0
      %p148 = por %p146, %p147
      %p149 = scmp.ne.s32.totalorder %s138, %s141
      %p150 = scmp.eq.s32.totalorder %s23, 1
      %p151 = por %p149, %p150
      %p152 = scmp.ne.s32.totalorder %s141, %s142
      %p153 = scmp.eq.s32.totalorder %s23, 0
      %p154 = por %p152, %p153
      %p155 = scmp.ne.s32.totalorder %s141, %s142
      %p156 = scmp.eq.s32.totalorder %s24, 1
      %p157 = por %p155, %p156
      %p159 = scmp.ne.s32.totalorder %s142, %s158
      %p160 = scmp.eq.s32.totalorder %s24, 0
      %p161 = por %p159, %p160
      %p162 = scmp.le.s32.totalorder 1, %s18
      %p163 = scmp.lt.s32.totalorder %s18, 3
      %p164 = pnand %p162, %p163
      %p165 = pneg %p164
      // Predicated region
      $region9: #{tpu_custom_call.1} parent=5 // pred_check
        _
      $region10: #{tpu_custom_call.1} parent=5 // pred_check_branch
        %167 = sbr.rel (%p164) target = $region12
      $region11: #{tpu_custom_call.1} parent=5 // pred_region
        %s168 = ssub.s32 %s18, 1
        // Predicated region
        $region13: #{tpu_custom_call.1} parent=11 // pred_check
          %p169 = pneg %p65
        $region14: #{tpu_custom_call.1} parent=11 // pred_check_branch
          %171 = sbr.rel (%p169) target = $region16
        $region15: #{tpu_custom_call.1} parent=11 // pred_region
          %s173 = ssub.s32 12288, 12288
          %174 = vsyncadd [#allocation6], %s173
          %s175 = sshll.u32 [#allocation5], 4
          %s176 = int_to_ptr.vmem [resolvable:$true] %s175
          %181 = dma.hbm_to_vmem [thread:$0]  %s1, 12288, %s176, [#allocation6], 384, 384, 24
        $region16: #{tpu_custom_call.1} parent=11 // pred_fallthru
          _
        // Predicated region
        $region17: #{tpu_custom_call.1} parent=11 // pred_check
          %p182 = pneg %p86
        $region18: #{tpu_custom_call.1} parent=11 // pred_check_branch
          %184 = sbr.rel (%p182) target = $region20
        $region19: #{tpu_custom_call.1} parent=11 // pred_region
          _
        $region20: #{tpu_custom_call.1} parent=11 // pred_fallthru
          _
        // Predicated region
        $region21: #{tpu_custom_call.1} parent=11 // pred_check
          %p185 = pneg %p107
        $region22: #{tpu_custom_call.1} parent=11 // pred_check_branch
          %187 = sbr.rel (%p185) target = $region24
        $region23: #{tpu_custom_call.1} parent=11 // pred_region
          %s189 = ssub.s32 4096, 4096
          %190 = vsyncadd [#allocation6], %s189
          %s191 = sshll.u32 [#allocation7], 4
          %s192 = int_to_ptr.vmem [resolvable:$true] %s191
          %197 = dma.hbm_to_vmem [thread:$0]  %s3, 4096, %s192, [#allocation6], 128, 128, 8
        $region24: #{tpu_custom_call.1} parent=11 // pred_fallthru
          _
        // Predicated region
        $region25: #{tpu_custom_call.1} parent=11 // pred_check
          %p198 = pneg %p128
        $region26: #{tpu_custom_call.1} parent=11 // pred_check_branch
          %200 = sbr.rel (%p198) target = $region28
        $region27: #{tpu_custom_call.1} parent=11 // pred_region
          _
        $region28: #{tpu_custom_call.1} parent=11 // pred_fallthru
          _
      $region12: #{tpu_custom_call.1} parent=5 // pred_fallthru
        _
      %p201 = scmp.lt.s32.totalorder %s18, 2
      // Predicated region
      $region29: #{tpu_custom_call.1} parent=5 // pred_check
        %p202 = pneg %p201
      $region30: #{tpu_custom_call.1} parent=5 // pred_check_branch
        %204 = sbr.rel (%p202) target = $region32
      $region31: #{tpu_custom_call.1} parent=5 // pred_region
        // Predicated region
        $region33: #{tpu_custom_call.1} parent=31 // pred_check
          %p205 = pneg %p38
        $region34: #{tpu_custom_call.1} parent=31 // pred_check_branch
          %207 = sbr.rel (%p205) target = $region36
        $region35: #{tpu_custom_call.1} parent=31 // pred_region
          %s208 = sand.u32 %s28, 1
          %s209 = scalar_lea.sflag [#allocation3], %s208
          %s210 = sand.u32 %s28, 1
          %s211 = smul.addr %s210, 16
          %s212 = scalar_lea.vmem [#allocation2], %s211
          %s214 = ssub.s32 256, 256
          %215 = vsyncadd %s209, %s214
          %s216 = smul.addr %s18, 2
          %s217 = smul.addr %s216, 128
          %s218 = scalar_lea.hbm %s0, %s217
          %s219 = sshll.u32 %s212, 4
          %s220 = int_to_ptr.vmem [resolvable:$true] %s219
          %225 = dma.hbm_to_vmem [thread:$0]  %s218, 256, %s220, %s209, 128, 128, 8
        $region36: #{tpu_custom_call.1} parent=31 // pred_fallthru
          _
      $region32: #{tpu_custom_call.1} parent=5 // pred_fallthru
        _
      %p226 = scmp.le.s32.totalorder 1, %s18
      %p227 = scmp.lt.s32.totalorder %s18, 3
      %p228 = pnand %p226, %p227
      %p229 = pneg %p228
      // Predicated region
      $region37: #{tpu_custom_call.1} parent=5 // pred_check
        _
      $region38: #{tpu_custom_call.1} parent=5 // pred_check_branch
        %231 = sbr.rel (%p228) target = $region40
      $region39: #{tpu_custom_call.1} parent=5 // pred_region
        %s232 = ssub.s32 %s18, 1
        %s233 = sand.u32 %s31, 1
        %s234 = scalar_lea.sflag [#allocation3], %s233
        %s235 = sand.u32 %s31, 1
        %s236 = smul.addr %s235, 16
        %s237 = scalar_lea.vmem [#allocation2], %s236
        // Predicated region
        $region41: #{tpu_custom_call.1} parent=39 // pred_check
          %p238 = pneg %p44
        $region42: #{tpu_custom_call.1} parent=39 // pred_check_branch
          %240 = sbr.rel (%p238) target = $region44
        $region43: #{tpu_custom_call.1} parent=39 // pred_region
          %241 = dma.done %s234, 256
        $region44: #{tpu_custom_call.1} parent=39 // pred_fallthru
          _
        // Predicated region
        $region45: #{tpu_custom_call.1} parent=39 // pred_check
          %p242 = pneg %p65
        $region46: #{tpu_custom_call.1} parent=39 // pred_check_branch
          %244 = sbr.rel (%p242) target = $region48
        $region47: #{tpu_custom_call.1} parent=39 // pred_region
          %245 = dma.done [#allocation6], 12288
        $region48: #{tpu_custom_call.1} parent=39 // pred_fallthru
          _
        // Predicated region
        $region49: #{tpu_custom_call.1} parent=39 // pred_check
          %p246 = pneg %p107
        $region50: #{tpu_custom_call.1} parent=39 // pred_check_branch
          %248 = sbr.rel (%p246) target = $region52
        $region51: #{tpu_custom_call.1} parent=39 // pred_region
          %249 = dma.done [#allocation6], 4096
        $region52: #{tpu_custom_call.1} parent=39 // pred_fallthru
          _
        %s250 = sand.u32 %s31, 1
        %s251 = scalar_lea.sflag [#allocation3], %s250
        %s252 = sand.u32 %s31, 1
        %s253 = smul.addr %s252, 16
        %s254 = scalar_lea.vmem [#allocation2], %s253
        %p255 = pneg %p44
        %p256 = pneg %p41
        %p257 = pneg %p65
        %p258 = pneg %p62
        %p259 = pneg %p86
        %p260 = pneg %p83
        %p261 = pneg %p107
        %p262 = pneg %p104
        %p263 = pneg %p128
        %p264 = pneg %p125
        %p265 = pneg %p154
        %p266 = pneg %p151
        %s267 = sand.u32 %s141, 1
        %s268 = scalar_lea.sflag [#allocation4], %s267
        %s269 = sand.u32 %s141, 1
        %s270 = smul.addr %s269, 16
        %s271 = scalar_lea.vmem [#allocation8], %s270
        %v272 = vld [vmem:[%s237] sm:$0xff]
        %v273 = vld [vmem:[%s237 + $0x8] sm:$0xff]
        %v274 = vlaneseq
        %v275 = vshrl.u32 %v274, 7
        %v276 = vadd.s32 %v275, 8
        %vm277 = vcmp.lt.s32.totalorder %v275, 0
        %v278 = vsub.s32 0, %v275
        %v279 = vsel %vm277, %v278, %v275
        %v280 = vshrl.u32 %v279, 4
        %v281 = vand.u32 %v279, 15
        %v282 = vsub.s32 0, %v281
        %v283 = vsel %vm277, %v282, %v281
        %vm284 = vcmp.lt.s32.totalorder %v276, 0
        %v285 = vsub.s32 0, %v276
        %v286 = vsel %vm284, %v285, %v276
        %v287 = vshrl.u32 %v286, 4
        %v288 = vand.u32 %v286, 15
        %v289 = vsub.s32 0, %v288
        %v290 = vsel %vm284, %v289, %v288
        %vm291 = vcmp.ne.s32.totalorder %v283, 0
        %vm292 = vcmp.ne.s32.totalorder %v290, 0
        %vm293 = vcmp.lt.s32.totalorder %v283, 0
        %vm294 = vcmp.lt.s32.totalorder %v290, 0
        %vm295 = vmand %vm293, %vm291
        %vm296 = vmand %vm294, %vm292
        %v297 = vadd.s32 %v283, 16
        %v298 = vadd.s32 %v290, 16
        %v299 = vsel %vm295, %v297, %v283
        %v300 = vsel %vm296, %v298, %v290
        %vm301 = vcmp.ne.s32.totalorder %v299, 0
        %vm302 = vcmp.ne.s32.totalorder %v300, 0
        %v303 = vsel %vm301, 1, 0
        %v304 = vsel %vm302, 1, 0
        %v305 = vcvt.s32.f32 %v303
        %v306 = vcvt.s32.f32 %v304
        %vm307 = vcmp.ne.s32.totalorder %v299, 15
        %vm308 = vcmp.ne.s32.totalorder %v300, 15
        %v309 = vsel %vm307, 1, 0
        %v310 = vsel %vm308, 1, 0
        %v311 = vcvt.s32.f32 %v309
        %v312 = vcvt.s32.f32 %v310
        %v313 = vxor.u32 %v272, 2147483648
        %v314 = vxor.u32 %v273, 2147483648
        %v315 = vmul.f32 %v313, 1.442695
        %v316 = vpow.pop %v315
        %v317 = vmul.f32 %v314, 1.442695
        %v318 = vpow.pop %v317
        %v319 = vadd.f32 %v316, 1.0
        %v320 = vadd.f32 %v318, 1.0
        %v321 = vrcp.pop %v319
        %v322 = vmul.f32 1.0, %v321
        %v323 = vrcp.pop %v320
        %v324 = vmul.f32 1.0, %v323
        %v325 = vmul.f32 %v272, %v322
        %v326 = vmul.f32 %v273, %v324
        %v327 = vld [vmem:[#allocation5] sm:$0xff]
        %v328 = vld [vmem:[#allocation5 + $0x8] sm:$0xff]
        %v329 = vld [vmem:[#allocation5 + $0x10] sm:$0xff]
        %v330 = vld [vmem:[#allocation5 + $0x18] sm:$0xff]
        %v331 = vld [vmem:[#allocation5 + $0x20] sm:$0xff]
        %v332 = vld [vmem:[#allocation5 + $0x28] sm:$0xff]
        %v333 = vld [vmem:[#allocation5 + $0x30] sm:$0xff]
        %v334 = vld [vmem:[#allocation5 + $0x38] sm:$0xff]
        %v335 = vld [vmem:[#allocation5 + $0x40] sm:$0xff]
        %v336 = vld [vmem:[#allocation5 + $0x48] sm:$0xff]
        %v337 = vld [vmem:[#allocation5 + $0x50] sm:$0xff]
        %v338 = vld [vmem:[#allocation5 + $0x58] sm:$0xff]
        %v339 = vld [vmem:[#allocation5 + $0x60] sm:$0xff]
        %v340 = vld [vmem:[#allocation5 + $0x68] sm:$0xff]
        %v341 = vld [vmem:[#allocation5 + $0x70] sm:$0xff]
        %v342 = vld [vmem:[#allocation5 + $0x78] sm:$0xff]
        %v343 = vld [vmem:[#allocation5 + $0x80] sm:$0xff]
        %v344 = vld [vmem:[#allocation5 + $0x88] sm:$0xff]
        %v345 = vld [vmem:[#allocation5 + $0x90] sm:$0xff]
        %v346 = vld [vmem:[#allocation5 + $0x98] sm:$0xff]
        %v347 = vld [vmem:[#allocation5 + $0xa0] sm:$0xff]
        %v348 = vld [vmem:[#allocation5 + $0xa8] sm:$0xff]
        %v349 = vld [vmem:[#allocation5 + $0xb0] sm:$0xff]
        %v350 = vld [vmem:[#allocation5 + $0xb8] sm:$0xff]
        %v351 = vld [vmem:[#allocation5 + $0xc0] sm:$0xff]
        %v352 = vld [vmem:[#allocation5 + $0xc8] sm:$0xff]
        %v353 = vld [vmem:[#allocation5 + $0xd0] sm:$0xff]
        %v354 = vld [vmem:[#allocation5 + $0xd8] sm:$0xff]
        %v355 = vld [vmem:[#allocation5 + $0xe0] sm:$0xff]
        %v356 = vld [vmem:[#allocation5 + $0xe8] sm:$0xff]
        %v357 = vld [vmem:[#allocation5 + $0xf0] sm:$0xff]
        %v358 = vld [vmem:[#allocation5 + $0xf8] sm:$0xff]
        %v359 = vld [vmem:[#allocation5 + $0x100] sm:$0xff]
        %v360 = vld [vmem:[#allocation5 + $0x108] sm:$0xff]
        %v361 = vld [vmem:[#allocation5 + $0x110] sm:$0xff]
        %v362 = vld [vmem:[#allocation5 + $0x118] sm:$0xff]
        %v363 = vld [vmem:[#allocation5 + $0x120] sm:$0xff]
        %v364 = vld [vmem:[#allocation5 + $0x128] sm:$0xff]
        %v365 = vld [vmem:[#allocation5 + $0x130] sm:$0xff]
        %v366 = vld [vmem:[#allocation5 + $0x138] sm:$0xff]
        %v367 = vld [vmem:[#allocation5 + $0x140] sm:$0xff]
        %v368 = vld [vmem:[#allocation5 + $0x148] sm:$0xff]
        %v369 = vld [vmem:[#allocation5 + $0x150] sm:$0xff]
        %v370 = vld [vmem:[#allocation5 + $0x158] sm:$0xff]
        %v371 = vld [vmem:[#allocation5 + $0x160] sm:$0xff]
        %v372 = vld [vmem:[#allocation5 + $0x168] sm:$0xff]
        %v373 = vld [vmem:[#allocation5 + $0x170] sm:$0xff]
        %v374 = vld [vmem:[#allocation5 + $0x178] sm:$0xff]
        %375 = vmatprep.subr.mxu0 %v373
        %376 = vmatpush1.msra.mxu0 %v372
        %377 = vmatprep.subr.mxu0 %v370
        %378 = vmatpush1.msra.mxu0 %v369
        %379 = vmatprep.subr.mxu0 %v367
        %380 = vmatpush1.msra.mxu0 %v366
        %381 = vmatprep.subr.mxu0 %v364
        %382 = vmatpush1.msra.mxu0 %v363
        %383 = vmatprep.subr.mxu0 %v361
        %384 = vmatpush1.msra.mxu0 %v360
        %385 = vmatprep.subr.mxu0 %v358
        %386 = vmatpush1.msra.mxu0 %v357
        %387 = vmatprep.subr.mxu0 %v355
        %388 = vmatpush1.msra.mxu0 %v354
        %389 = vmatprep.subr.mxu0 %v352
        %390 = vmatpush1.msra.mxu0 %v351
        %391 = vmatprep.subr.mxu0 %v349
        %392 = vmatpush1.msra.mxu0 %v348
        %393 = vmatprep.subr.mxu0 %v346
        %394 = vmatpush1.msra.mxu0 %v345
        %395 = vmatprep.subr.mxu0 %v343
        %396 = vmatpush1.msra.mxu0 %v342
        %397 = vmatprep.subr.mxu0 %v340
        %398 = vmatpush1.msra.mxu0 %v339
        %399 = vmatprep.subr.mxu0 %v337
        %400 = vmatpush1.msra.mxu0 %v336
        %401 = vmatprep.subr.mxu0 %v334
        %402 = vmatpush1.msra.mxu0 %v333
        %403 = vmatprep.subr.mxu0 %v331
        %404 = vmatpush1.msra.mxu0 %v330
        %405 = vmatprep.subr.mxu0 %v328
        %406 = vmatpush1.msra.mxu0 %v327
        %407 = vmatprep.subr.mxu0 0.0
        %408 = vmatpush2.msra.mxu0 0.0
        %409 = vmatprep.subr.mxu0 0.0
        %410 = vmatpush2.msra.mxu0 0.0
        %411 = vmatprep.subr.mxu0 0.0
        %412 = vmatpush2.msra.mxu0 0.0
        %413 = vmatprep.subr.mxu0 0.0
        %414 = vmatpush2.msra.mxu0 0.0
        %415 = vmatprep.subr.mxu0 0.0
        %416 = vmatpush2.msra.mxu0 0.0
        %417 = vmatprep.subr.mxu0 0.0
        %418 = vmatpush2.msra.mxu0 0.0
        %419 = vmatprep.subr.mxu0 0.0
        %420 = vmatpush2.msra.mxu0 0.0
        %421 = vmatprep.subr.mxu0 0.0
        %422 = vmatpush2.msra.mxu0 0.0
        %423 = vmatprep.subr.mxu0 0.0
        %424 = vmatpush2.msra.mxu0 0.0
        %425 = vmatprep.subr.mxu0 0.0
        %426 = vmatpush2.msra.mxu0 0.0
        %427 = vmatprep.subr.mxu0 0.0
        %428 = vmatpush2.msra.mxu0 0.0
        %429 = vmatprep.subr.mxu0 0.0
        %430 = vmatpush2.msra.mxu0 0.0
        %431 = vmatprep.subr.mxu0 0.0
        %432 = vmatpush2.msra.mxu0 0.0
        %433 = vmatprep.subr.mxu0 0.0
        %434 = vmatpush2.msra.mxu0 0.0
        %435 = vmatprep.subr.mxu0 0.0
        %436 = vmatpush2.msra.mxu0 0.0
        %437 = vmatprep.subr.mxu0 0.0
        %438 = vmatpush2.msra.mxu0 0.0
        %439 = vmatprep.mubr.f32.mxu0 0.0
        %440 = vmatmul.mubr.f32.gmra.mxu0 %v325
        %v441 = vpop.f32.mrf.mxu0
        %v442 = vadd.f32 0.0, %v441
        %v443 = vpop.f32.mrf.mxu0
        %v444 = vadd.f32 0.0, %v443
        %445 = vmatprep.mubr.f32.mxu0 0.0
        %446 = vmatmul.mubr.f32.gmra.mxu0 %v326
        %v447 = vpop.f32.mrf.mxu0
        %v448 = vadd.f32 0.0, %v447
        %v449 = vpop.f32.mrf.mxu0
        %v450 = vadd.f32 0.0, %v449
        %451 = vdwg.mxu0
        %452 = vmatprep.subr.mxu0 0.0
        %453 = vmatpush1.msra.mxu0 %v374
        %454 = vmatprep.subr.mxu0 0.0
        %455 = vmatpush1.msra.mxu0 %v371
        %456 = vmatprep.subr.mxu0 0.0
        %457 = vmatpush1.msra.mxu0 %v368
        %458 = vmatprep.subr.mxu0 0.0
        %459 = vmatpush1.msra.mxu0 %v365
        %460 = vmatprep.subr.mxu0 0.0
        %461 = vmatpush1.msra.mxu0 %v362
        %462 = vmatprep.subr.mxu0 0.0
        %463 = vmatpush1.msra.mxu0 %v359
        %464 = vmatprep.subr.mxu0 0.0
        %465 = vmatpush1.msra.mxu0 %v356
        %466 = vmatprep.subr.mxu0 0.0
        %467 = vmatpush1.msra.mxu0 %v353
        %468 = vmatprep.subr.mxu0 0.0
        %469 = vmatpush1.msra.mxu0 %v350
        %470 = vmatprep.subr.mxu0 0.0
        %471 = vmatpush1.msra.mxu0 %v347
        %472 = vmatprep.subr.mxu0 0.0
        %473 = vmatpush1.msra.mxu0 %v344
        %474 = vmatprep.subr.mxu0 0.0
        %475 = vmatpush1.msra.mxu0 %v341
        %476 = vmatprep.subr.mxu0 0.0
        %477 = vmatpush1.msra.mxu0 %v338
        %478 = vmatprep.subr.mxu0 0.0
        %479 = vmatpush1.msra.mxu0 %v335
        %480 = vmatprep.subr.mxu0 0.0
        %481 = vmatpush1.msra.mxu0 %v332
        %482 = vmatprep.subr.mxu0 0.0
        %483 = vmatpush1.msra.mxu0 %v329
        %484 = vmatprep.subr.mxu0 0.0
        %485 = vmatpush2.msra.mxu0 0.0
        %486 = vmatprep.subr.mxu0 0.0
        %487 = vmatpush2.msra.mxu0 0.0
        %488 = vmatprep.subr.mxu0 0.0
        %489 = vmatpush2.msra.mxu0 0.0
        %490 = vmatprep.subr.mxu0 0.0
        %491 = vmatpush2.msra.mxu0 0.0
        %492 = vmatprep.subr.mxu0 0.0
        %493 = vmatpush2.msra.mxu0 0.0
        %494 = vmatprep.subr.mxu0 0.0
        %495 = vmatpush2.msra.mxu0 0.0
        %496 = vmatprep.subr.mxu0 0.0
        %497 = vmatpush2.msra.mxu0 0.0
        %498 = vmatprep.subr.mxu0 0.0
        %499 = vmatpush2.msra.mxu0 0.0
        %500 = vmatprep.subr.mxu0 0.0
        %501 = vmatpush2.msra.mxu0 0.0
        %502 = vmatprep.subr.mxu0 0.0
        %503 = vmatpush2.msra.mxu0 0.0
        %504 = vmatprep.subr.mxu0 0.0
        %505 = vmatpush2.msra.mxu0 0.0
        %506 = vmatprep.subr.mxu0 0.0
        %507 = vmatpush2.msra.mxu0 0.0
        %508 = vmatprep.subr.mxu0 0.0
        %509 = vmatpush2.msra.mxu0 0.0
        %510 = vmatprep.subr.mxu0 0.0
        %511 = vmatpush2.msra.mxu0 0.0
        %512 = vmatprep.subr.mxu0 0.0
        %513 = vmatpush2.msra.mxu0 0.0
        %514 = vmatprep.subr.mxu0 0.0
        %515 = vmatpush2.msra.mxu0 0.0
        %516 = vmatprep.mubr.f32.mxu0 0.0
        %517 = vmatmul.mubr.f32.gmra.mxu0 %v325
        %v518 = vpop.f32.mrf.mxu0
        %v519 = vadd.f32 0.0, %v518
        %v520 = vpop.f32.mrf.mxu0
        %521 = vmatprep.mubr.f32.mxu0 0.0
        %522 = vmatmul.mubr.f32.gmra.mxu0 %v326
        %v523 = vpop.f32.mrf.mxu0
        %v524 = vadd.f32 0.0, %v523
        %v525 = vpop.f32.mrf.mxu0
        %526 = vdwg.mxu0
        %v527 = vrot.slane %v442, 7
        %v528 = vrot.slane %v448, 7
        %vm529 = vcmp.lt.s32.totalorder %v275, 1
        %v530 = vsel %vm529, %v527, %v528
        %v531 = vsel %vm529, %v528, %v527
        %v532 = vmul.f32 %v531, %v305
        %v533 = vmul.f32 %v530, %v306
        %v534 = vadd.f32 %v444, %v532
        %v535 = vadd.f32 %v450, %v533
        %v536 = vrot.slane %v519, 1
        %v537 = vrot.slane %v524, 1
        %vm538 = vcmp.lt.s32.totalorder %v275, 7
        %v539 = vsel %vm538, %v536, %v537
        %v540 = vsel %vm538, %v537, %v536
        %v541 = vmul.f32 %v539, %v311
        %v542 = vmul.f32 %v540, %v312
        %v543 = vadd.f32 %v534, %v541
        %v544 = vadd.f32 %v535, %v542
        %v545 = vld [vmem:[%s2] sm:$0x1]
        %v547 = vlaneseq
        %v548 = vshrl.u32 %v547, 7
        %v549 = vsub.s32 0, %v548
        %v550 = vrot.slane %v545, %v549
        %v552 = vadd.f32 %v543, %v550
        %v553 = vadd.f32 %v544, %v550
        %v554 = vxor.u32 %v552, 2147483648
        %v555 = vxor.u32 %v553, 2147483648
        %v556 = vmul.f32 %v554, 1.442695
        %v557 = vpow.pop %v556
        %v558 = vmul.f32 %v555, 1.442695
        %v559 = vpow.pop %v558
        %v560 = vadd.f32 %v557, 1.0
        %v561 = vadd.f32 %v559, 1.0
        %v562 = vrcp.pop %v560
        %v563 = vmul.f32 1.0, %v562
        %v564 = vrcp.pop %v561
        %v565 = vmul.f32 1.0, %v564
        %v566 = vmul.f32 %v552, %v563
        %v567 = vmul.f32 %v553, %v565
        %v568 = vld [vmem:[#allocation7] sm:$0xff]
        %v569 = vld [vmem:[#allocation7 + $0x8] sm:$0xff]
        %v570 = vld [vmem:[#allocation7 + $0x10] sm:$0xff]
        %v571 = vld [vmem:[#allocation7 + $0x18] sm:$0xff]
        %v572 = vld [vmem:[#allocation7 + $0x20] sm:$0xff]
        %v573 = vld [vmem:[#allocation7 + $0x28] sm:$0xff]
        %v574 = vld [vmem:[#allocation7 + $0x30] sm:$0xff]
        %v575 = vld [vmem:[#allocation7 + $0x38] sm:$0xff]
        %v576 = vld [vmem:[#allocation7 + $0x40] sm:$0xff]
        %v577 = vld [vmem:[#allocation7 + $0x48] sm:$0xff]
        %v578 = vld [vmem:[#allocation7 + $0x50] sm:$0xff]
        %v579 = vld [vmem:[#allocation7 + $0x58] sm:$0xff]
        %v580 = vld [vmem:[#allocation7 + $0x60] sm:$0xff]
        %v581 = vld [vmem:[#allocation7 + $0x68] sm:$0xff]
        %v582 = vld [vmem:[#allocation7 + $0x70] sm:$0xff]
        %v583 = vld [vmem:[#allocation7 + $0x78] sm:$0xff]
        %v584 = vld [vmem:[%s4] sm:$0x1]
        %v586 = vlaneseq
        %v587 = vshrl.u32 %v586, 7
        %v588 = vsub.s32 0, %v587
        %v589 = vrot.slane %v584, %v588
        %591 = vmatprep.subr.mxu0 0.0
        %592 = vmatpush1.msra.mxu0 %v583
        %593 = vmatprep.subr.mxu0 0.0
        %594 = vmatpush1.msra.mxu0 %v582
        %595 = vmatprep.subr.mxu0 0.0
        %596 = vmatpush1.msra.mxu0 %v581
        %597 = vmatprep.subr.mxu0 0.0
        %598 = vmatpush1.msra.mxu0 %v580
        %599 = vmatprep.subr.mxu0 0.0
        %600 = vmatpush1.msra.mxu0 %v579
        %601 = vmatprep.subr.mxu0 0.0
        %602 = vmatpush1.msra.mxu0 %v578
        %603 = vmatprep.subr.mxu0 0.0
        %604 = vmatpush1.msra.mxu0 %v577
        %605 = vmatprep.subr.mxu0 0.0
        %606 = vmatpush1.msra.mxu0 %v576
        %607 = vmatprep.subr.mxu0 0.0
        %608 = vmatpush1.msra.mxu0 %v575
        %609 = vmatprep.subr.mxu0 0.0
        %610 = vmatpush1.msra.mxu0 %v574
        %611 = vmatprep.subr.mxu0 0.0
        %612 = vmatpush1.msra.mxu0 %v573
        %613 = vmatprep.subr.mxu0 0.0
        %614 = vmatpush1.msra.mxu0 %v572
        %615 = vmatprep.subr.mxu0 0.0
        %616 = vmatpush1.msra.mxu0 %v571
        %617 = vmatprep.subr.mxu0 0.0
        %618 = vmatpush1.msra.mxu0 %v570
        %619 = vmatprep.subr.mxu0 0.0
        %620 = vmatpush1.msra.mxu0 %v569
        %621 = vmatprep.subr.mxu0 0.0
        %622 = vmatpush1.msra.mxu0 %v568
        %623 = vmatprep.subr.mxu0 0.0
        %624 = vmatpush2.msra.mxu0 0.0
        %625 = vmatprep.subr.mxu0 0.0
        %626 = vmatpush2.msra.mxu0 0.0
        %627 = vmatprep.subr.mxu0 0.0
        %628 = vmatpush2.msra.mxu0 0.0
        %629 = vmatprep.subr.mxu0 0.0
        %630 = vmatpush2.msra.mxu0 0.0
        %631 = vmatprep.subr.mxu0 0.0
        %632 = vmatpush2.msra.mxu0 0.0
        %633 = vmatprep.subr.mxu0 0.0
        %634 = vmatpush2.msra.mxu0 0.0
        %635 = vmatprep.subr.mxu0 0.0
        %636 = vmatpush2.msra.mxu0 0.0
        %637 = vmatprep.subr.mxu0 0.0
        %638 = vmatpush2.msra.mxu0 0.0
        %639 = vmatprep.subr.mxu0 0.0
        %640 = vmatpush2.msra.mxu0 0.0
        %641 = vmatprep.subr.mxu0 0.0
        %642 = vmatpush2.msra.mxu0 0.0
        %643 = vmatprep.subr.mxu0 0.0
        %644 = vmatpush2.msra.mxu0 0.0
        %645 = vmatprep.subr.mxu0 0.0
        %646 = vmatpush2.msra.mxu0 0.0
        %647 = vmatprep.subr.mxu0 0.0
        %648 = vmatpush2.msra.mxu0 0.0
        %649 = vmatprep.subr.mxu0 0.0
        %650 = vmatpush2.msra.mxu0 0.0
        %651 = vmatprep.subr.mxu0 0.0
        %652 = vmatpush2.msra.mxu0 0.0
        %653 = vmatprep.subr.mxu0 0.0
        %654 = vmatpush2.msra.mxu0 0.0
        %655 = vmatprep.mubr.f32.mxu0 0.0
        %656 = vmatmul.mubr.f32.gmra.mxu0 %v566
        %v657 = vpop.f32.mrf.mxu0
        %v658 = vadd.f32 %v589, %v657
        %v659 = vpop.f32.mrf.mxu0
        %660 = vmatprep.mubr.f32.mxu0 0.0
        %661 = vmatmul.mubr.f32.gmra.mxu0 %v567
        %v662 = vpop.f32.mrf.mxu0
        %v663 = vadd.f32 %v589, %v662
        %v664 = vpop.f32.mrf.mxu0
        %665 = vdwg.mxu0
        %v666 = vadd.f32 %v658, %v272
        %v667 = vadd.f32 %v663, %v273
        %v668 = vxor.u32 %v666, 2147483648
        %v669 = vxor.u32 %v667, 2147483648
        %v670 = vmul.f32 %v668, 1.442695
        %v671 = vpow.pop %v670
        %v672 = vmul.f32 %v669, 1.442695
        %v673 = vpow.pop %v672
        %v674 = vadd.f32 %v671, 1.0
        %v675 = vadd.f32 %v673, 1.0
        %v676 = vrcp.pop %v674
        %v677 = vmul.f32 1.0, %v676
        %v678 = vrcp.pop %v675
        %v679 = vmul.f32 1.0, %v678
        %v680 = vmul.f32 %v666, %v677
        %v681 = vmul.f32 %v667, %v679
        %s682 = scalar_lea.vmem [#allocation5], 384
        %v683 = vld [vmem:[%s682] sm:$0xff]
        %v684 = vld [vmem:[%s682 + $0x8] sm:$0xff]
        %v685 = vld [vmem:[%s682 + $0x10] sm:$0xff]
        %v686 = vld [vmem:[%s682 + $0x18] sm:$0xff]
        %v687 = vld [vmem:[%s682 + $0x20] sm:$0xff]
        %v688 = vld [vmem:[%s682 + $0x28] sm:$0xff]
        %v689 = vld [vmem:[%s682 + $0x30] sm:$0xff]
        %v690 = vld [vmem:[%s682 + $0x38] sm:$0xff]
        %v691 = vld [vmem:[%s682 + $0x40] sm:$0xff]
        %v692 = vld [vmem:[%s682 + $0x48] sm:$0xff]
        %v693 = vld [vmem:[%s682 + $0x50] sm:$0xff]
        %v694 = vld [vmem:[%s682 + $0x58] sm:$0xff]
        %v695 = vld [vmem:[%s682 + $0x60] sm:$0xff]
        %v696 = vld [vmem:[%s682 + $0x68] sm:$0xff]
        %v697 = vld [vmem:[%s682 + $0x70] sm:$0xff]
        %v698 = vld [vmem:[%s682 + $0x78] sm:$0xff]
        %v699 = vld [vmem:[%s682 + $0x80] sm:$0xff]
        %v700 = vld [vmem:[%s682 + $0x88] sm:$0xff]
        %v701 = vld [vmem:[%s682 + $0x90] sm:$0xff]
        %v702 = vld [vmem:[%s682 + $0x98] sm:$0xff]
        %v703 = vld [vmem:[%s682 + $0xa0] sm:$0xff]
        %v704 = vld [vmem:[%s682 + $0xa8] sm:$0xff]
        %v705 = vld [vmem:[%s682 + $0xb0] sm:$0xff]
        %v706 = vld [vmem:[%s682 + $0xb8] sm:$0xff]
        %v707 = vld [vmem:[%s682 + $0xc0] sm:$0xff]
        %v708 = vld [vmem:[%s682 + $0xc8] sm:$0xff]
        %v709 = vld [vmem:[%s682 + $0xd0] sm:$0xff]
        %v710 = vld [vmem:[%s682 + $0xd8] sm:$0xff]
        %v711 = vld [vmem:[%s682 + $0xe0] sm:$0xff]
        %v712 = vld [vmem:[%s682 + $0xe8] sm:$0xff]
        %v713 = vld [vmem:[%s682 + $0xf0] sm:$0xff]
        %v714 = vld [vmem:[%s682 + $0xf8] sm:$0xff]
        %v715 = vld [vmem:[%s682 + $0x100] sm:$0xff]
        %v716 = vld [vmem:[%s682 + $0x108] sm:$0xff]
        %v717 = vld [vmem:[%s682 + $0x110] sm:$0xff]
        %v718 = vld [vmem:[%s682 + $0x118] sm:$0xff]
        %v719 = vld [vmem:[%s682 + $0x120] sm:$0xff]
        %v720 = vld [vmem:[%s682 + $0x128] sm:$0xff]
        %v721 = vld [vmem:[%s682 + $0x130] sm:$0xff]
        %v722 = vld [vmem:[%s682 + $0x138] sm:$0xff]
        %v723 = vld [vmem:[%s682 + $0x140] sm:$0xff]
        %v724 = vld [vmem:[%s682 + $0x148] sm:$0xff]
        %v725 = vld [vmem:[%s682 + $0x150] sm:$0xff]
        %v726 = vld [vmem:[%s682 + $0x158] sm:$0xff]
        %v727 = vld [vmem:[%s682 + $0x160] sm:$0xff]
        %v728 = vld [vmem:[%s682 + $0x168] sm:$0xff]
        %v729 = vld [vmem:[%s682 + $0x170] sm:$0xff]
        %v730 = vld [vmem:[%s682 + $0x178] sm:$0xff]
        %731 = vmatprep.subr.mxu0 %v729
        %732 = vmatpush1.msra.mxu0 %v728
        %733 = vmatprep.subr.mxu0 %v726
        %734 = vmatpush1.msra.mxu0 %v725
        %735 = vmatprep.subr.mxu0 %v723
        %736 = vmatpush1.msra.mxu0 %v722
        %737 = vmatprep.subr.mxu0 %v720
        %738 = vmatpush1.msra.mxu0 %v719
        %739 = vmatprep.subr.mxu0 %v717
        %740 = vmatpush1.msra.mxu0 %v716
        %741 = vmatprep.subr.mxu0 %v714
        %742 = vmatpush1.msra.mxu0 %v713
        %743 = vmatprep.subr.mxu0 %v711
        %744 = vmatpush1.msra.mxu0 %v710
        %745 = vmatprep.subr.mxu0 %v708
        %746 = vmatpush1.msra.mxu0 %v707
        %747 = vmatprep.subr.mxu0 %v705
        %748 = vmatpush1.msra.mxu0 %v704
        %749 = vmatprep.subr.mxu0 %v702
        %750 = vmatpush1.msra.mxu0 %v701
        %751 = vmatprep.subr.mxu0 %v699
        %752 = vmatpush1.msra.mxu0 %v698
        %753 = vmatprep.subr.mxu0 %v696
        %754 = vmatpush1.msra.mxu0 %v695
        %755 = vmatprep.subr.mxu0 %v693
        %756 = vmatpush1.msra.mxu0 %v692
        %757 = vmatprep.subr.mxu0 %v690
        %758 = vmatpush1.msra.mxu0 %v689
        %759 = vmatprep.subr.mxu0 %v687
        %760 = vmatpush1.msra.mxu0 %v686
        %761 = vmatprep.subr.mxu0 %v684
        %762 = vmatpush1.msra.mxu0 %v683
        %763 = vmatprep.subr.mxu0 0.0
        %764 = vmatpush2.msra.mxu0 0.0
        %765 = vmatprep.subr.mxu0 0.0
        %766 = vmatpush2.msra.mxu0 0.0
        %767 = vmatprep.subr.mxu0 0.0
        %768 = vmatpush2.msra.mxu0 0.0
        %769 = vmatprep.subr.mxu0 0.0
        %770 = vmatpush2.msra.mxu0 0.0
        %771 = vmatprep.subr.mxu0 0.0
        %772 = vmatpush2.msra.mxu0 0.0
        %773 = vmatprep.subr.mxu0 0.0
        %774 = vmatpush2.msra.mxu0 0.0
        %775 = vmatprep.subr.mxu0 0.0
        %776 = vmatpush2.msra.mxu0 0.0
        %777 = vmatprep.subr.mxu0 0.0
        %778 = vmatpush2.msra.mxu0 0.0
        %779 = vmatprep.subr.mxu0 0.0
        %780 = vmatpush2.msra.mxu0 0.0
        %781 = vmatprep.subr.mxu0 0.0
        %782 = vmatpush2.msra.mxu0 0.0
        %783 = vmatprep.subr.mxu0 0.0
        %784 = vmatpush2.msra.mxu0 0.0
        %785 = vmatprep.subr.mxu0 0.0
        %786 = vmatpush2.msra.mxu0 0.0
        %787 = vmatprep.subr.mxu0 0.0
        %788 = vmatpush2.msra.mxu0 0.0
        %789 = vmatprep.subr.mxu0 0.0
        %790 = vmatpush2.msra.mxu0 0.0
        %791 = vmatprep.subr.mxu0 0.0
        %792 = vmatpush2.msra.mxu0 0.0
        %793 = vmatprep.subr.mxu0 0.0
        %794 = vmatpush2.msra.mxu0 0.0
        %795 = vmatprep.mubr.f32.mxu0 0.0
        %796 = vmatmul.mubr.f32.gmra.mxu0 %v680
        %v797 = vpop.f32.mrf.mxu0
        %v798 = vadd.f32 0.0, %v797
        %v799 = vpop.f32.mrf.mxu0
        %v800 = vadd.f32 0.0, %v799
        %801 = vmatprep.mubr.f32.mxu0 0.0
        %802 = vmatmul.mubr.f32.gmra.mxu0 %v681
        %v803 = vpop.f32.mrf.mxu0
        %v804 = vadd.f32 0.0, %v803
        %v805 = vpop.f32.mrf.mxu0
        %v806 = vadd.f32 0.0, %v805
        %807 = vdwg.mxu0
        %808 = vmatprep.subr.mxu0 0.0
        %809 = vmatpush1.msra.mxu0 %v730
        %810 = vmatprep.subr.mxu0 0.0
        %811 = vmatpush1.msra.mxu0 %v727
        %812 = vmatprep.subr.mxu0 0.0
        %813 = vmatpush1.msra.mxu0 %v724
        %814 = vmatprep.subr.mxu0 0.0
        %815 = vmatpush1.msra.mxu0 %v721
        %816 = vmatprep.subr.mxu0 0.0
        %817 = vmatpush1.msra.mxu0 %v718
        %818 = vmatprep.subr.mxu0 0.0
        %819 = vmatpush1.msra.mxu0 %v715
        %820 = vmatprep.subr.mxu0 0.0
        %821 = vmatpush1.msra.mxu0 %v712
        %822 = vmatprep.subr.mxu0 0.0
        %823 = vmatpush1.msra.mxu0 %v709
        %824 = vmatprep.subr.mxu0 0.0
        %825 = vmatpush1.msra.mxu0 %v706
        %826 = vmatprep.subr.mxu0 0.0
        %827 = vmatpush1.msra.mxu0 %v703
        %828 = vmatprep.subr.mxu0 0.0
        %829 = vmatpush1.msra.mxu0 %v700
        %830 = vmatprep.subr.mxu0 0.0
        %831 = vmatpush1.msra.mxu0 %v697
        %832 = vmatprep.subr.mxu0 0.0
        %833 = vmatpush1.msra.mxu0 %v694
        %834 = vmatprep.subr.mxu0 0.0
        %835 = vmatpush1.msra.mxu0 %v691
        %836 = vmatprep.subr.mxu0 0.0
        %837 = vmatpush1.msra.mxu0 %v688
        %838 = vmatprep.subr.mxu0 0.0
        %839 = vmatpush1.msra.mxu0 %v685
        %840 = vmatprep.subr.mxu0 0.0
        %841 = vmatpush2.msra.mxu0 0.0
        %842 = vmatprep.subr.mxu0 0.0
        %843 = vmatpush2.msra.mxu0 0.0
        %844 = vmatprep.subr.mxu0 0.0
        %845 = vmatpush2.msra.mxu0 0.0
        %846 = vmatprep.subr.mxu0 0.0
        %847 = vmatpush2.msra.mxu0 0.0
        %848 = vmatprep.subr.mxu0 0.0
        %849 = vmatpush2.msra.mxu0 0.0
        %850 = vmatprep.subr.mxu0 0.0
        %851 = vmatpush2.msra.mxu0 0.0
        %852 = vmatprep.subr.mxu0 0.0
        %853 = vmatpush2.msra.mxu0 0.0
        %854 = vmatprep.subr.mxu0 0.0
        %855 = vmatpush2.msra.mxu0 0.0
        %856 = vmatprep.subr.mxu0 0.0
        %857 = vmatpush2.msra.mxu0 0.0
        %858 = vmatprep.subr.mxu0 0.0
        %859 = vmatpush2.msra.mxu0 0.0
        %860 = vmatprep.subr.mxu0 0.0
        %861 = vmatpush2.msra.mxu0 0.0
        %862 = vmatprep.subr.mxu0 0.0
        %863 = vmatpush2.msra.mxu0 0.0
        %864 = vmatprep.subr.mxu0 0.0
        %865 = vmatpush2.msra.mxu0 0.0
        %866 = vmatprep.subr.mxu0 0.0
        %867 = vmatpush2.msra.mxu0 0.0
        %868 = vmatprep.subr.mxu0 0.0
        %869 = vmatpush2.msra.mxu0 0.0
        %870 = vmatprep.subr.mxu0 0.0
        %871 = vmatpush2.msra.mxu0 0.0
        %872 = vmatprep.mubr.f32.mxu0 0.0
        %873 = vmatmul.mubr.f32.gmra.mxu0 %v680
        %v874 = vpop.f32.mrf.mxu0
        %v875 = vadd.f32 0.0, %v874
        %v876 = vpop.f32.mrf.mxu0
        %877 = vmatprep.mubr.f32.mxu0 0.0
        %878 = vmatmul.mubr.f32.gmra.mxu0 %v681
        %v879 = vpop.f32.mrf.mxu0
        %v880 = vadd.f32 0.0, %v879
        %v881 = vpop.f32.mrf.mxu0
        %882 = vdwg.mxu0
        %v883 = vrot.slane %v798, 7
        %v884 = vrot.slane %v804, 7
        %v885 = vsel %vm529, %v883, %v884
        %v886 = vsel %vm529, %v884, %v883
        %v887 = vmul.f32 %v886, %v305
        %v888 = vmul.f32 %v885, %v306
        %v889 = vadd.f32 %v800, %v887
        %v890 = vadd.f32 %v806, %v888
        %v891 = vrot.slane %v875, 1
        %v892 = vrot.slane %v880, 1
        %v893 = vsel %vm538, %v891, %v892
        %v894 = vsel %vm538, %v892, %v891
        %v895 = vmul.f32 %v893, %v311
        %v896 = vmul.f32 %v894, %v312
        %v897 = vadd.f32 %v889, %v895
        %v898 = vadd.f32 %v890, %v896
        %s899 = scalar_lea.vmem %s2, 1
        %v900 = vld [vmem:[%s899] sm:$0x1]
        %v902 = vlaneseq
        %v903 = vshrl.u32 %v902, 7
        %v904 = vsub.s32 0, %v903
        %v905 = vrot.slane %v900, %v904
        %v907 = vadd.f32 %v897, %v905
        %v908 = vadd.f32 %v898, %v905
        %v909 = vxor.u32 %v907, 2147483648
        %v910 = vxor.u32 %v908, 2147483648
        %v911 = vmul.f32 %v909, 1.442695
        %v912 = vpow.pop %v911
        %v913 = vmul.f32 %v910, 1.442695
        %v914 = vpow.pop %v913
        %v915 = vadd.f32 %v912, 1.0
        %v916 = vadd.f32 %v914, 1.0
        %v917 = vrcp.pop %v915
        %v918 = vmul.f32 1.0, %v917
        %v919 = vrcp.pop %v916
        %v920 = vmul.f32 1.0, %v919
        %v921 = vmul.f32 %v907, %v918
        %v922 = vmul.f32 %v908, %v920
        %s923 = scalar_lea.vmem [#allocation7], 128
        %v924 = vld [vmem:[%s923] sm:$0xff]
        %v925 = vld [vmem:[%s923 + $0x8] sm:$0xff]
        %v926 = vld [vmem:[%s923 + $0x10] sm:$0xff]
        %v927 = vld [vmem:[%s923 + $0x18] sm:$0xff]
        %v928 = vld [vmem:[%s923 + $0x20] sm:$0xff]
        %v929 = vld [vmem:[%s923 + $0x28] sm:$0xff]
        %v930 = vld [vmem:[%s923 + $0x30] sm:$0xff]
        %v931 = vld [vmem:[%s923 + $0x38] sm:$0xff]
        %v932 = vld [vmem:[%s923 + $0x40] sm:$0xff]
        %v933 = vld [vmem:[%s923 + $0x48] sm:$0xff]
        %v934 = vld [vmem:[%s923 + $0x50] sm:$0xff]
        %v935 = vld [vmem:[%s923 + $0x58] sm:$0xff]
        %v936 = vld [vmem:[%s923 + $0x60] sm:$0xff]
        %v937 = vld [vmem:[%s923 + $0x68] sm:$0xff]
        %v938 = vld [vmem:[%s923 + $0x70] sm:$0xff]
        %v939 = vld [vmem:[%s923 + $0x78] sm:$0xff]
        %s940 = scalar_lea.vmem %s4, 1
        %v941 = vld [vmem:[%s940] sm:$0x1]
        %v943 = vlaneseq
        %v944 = vshrl.u32 %v943, 7
        %v945 = vsub.s32 0, %v944
        %v946 = vrot.slane %v941, %v945
        %948 = vmatprep.subr.mxu0 0.0
        %949 = vmatpush1.msra.mxu0 %v939
        %950 = vmatprep.subr.mxu0 0.0
        %951 = vmatpush1.msra.mxu0 %v938
        %952 = vmatprep.subr.mxu0 0.0
        %953 = vmatpush1.msra.mxu0 %v937
        %954 = vmatprep.subr.mxu0 0.0
        %955 = vmatpush1.msra.mxu0 %v936
        %956 = vmatprep.subr.mxu0 0.0
        %957 = vmatpush1.msra.mxu0 %v935
        %958 = vmatprep.subr.mxu0 0.0
        %959 = vmatpush1.msra.mxu0 %v934
        %960 = vmatprep.subr.mxu0 0.0
        %961 = vmatpush1.msra.mxu0 %v933
        %962 = vmatprep.subr.mxu0 0.0
        %963 = vmatpush1.msra.mxu0 %v932
        %964 = vmatprep.subr.mxu0 0.0
        %965 = vmatpush1.msra.mxu0 %v931
        %966 = vmatprep.subr.mxu0 0.0
        %967 = vmatpush1.msra.mxu0 %v930
        %968 = vmatprep.subr.mxu0 0.0
        %969 = vmatpush1.msra.mxu0 %v929
        %970 = vmatprep.subr.mxu0 0.0
        %971 = vmatpush1.msra.mxu0 %v928
        %972 = vmatprep.subr.mxu0 0.0
        %973 = vmatpush1.msra.mxu0 %v927
        %974 = vmatprep.subr.mxu0 0.0
        %975 = vmatpush1.msra.mxu0 %v926
        %976 = vmatprep.subr.mxu0 0.0
        %977 = vmatpush1.msra.mxu0 %v925
        %978 = vmatprep.subr.mxu0 0.0
        %979 = vmatpush1.msra.mxu0 %v924
        %980 = vmatprep.subr.mxu0 0.0
        %981 = vmatpush2.msra.mxu0 0.0
        %982 = vmatprep.subr.mxu0 0.0
        %983 = vmatpush2.msra.mxu0 0.0
        %984 = vmatprep.subr.mxu0 0.0
        %985 = vmatpush2.msra.mxu0 0.0
        %986 = vmatprep.subr.mxu0 0.0
        %987 = vmatpush2.msra.mxu0 0.0
        %988 = vmatprep.subr.mxu0 0.0
        %989 = vmatpush2.msra.mxu0 0.0
        %990 = vmatprep.subr.mxu0 0.0
        %991 = vmatpush2.msra.mxu0 0.0
        %992 = vmatprep.subr.mxu0 0.0
        %993 = vmatpush2.msra.mxu0 0.0
        %994 = vmatprep.subr.mxu0 0.0
        %995 = vmatpush2.msra.mxu0 0.0
        %996 = vmatprep.subr.mxu0 0.0
        %997 = vmatpush2.msra.mxu0 0.0
        %998 = vmatprep.subr.mxu0 0.0
        %999 = vmatpush2.msra.mxu0 0.0
        %1000 = vmatprep.subr.mxu0 0.0
        %1001 = vmatpush2.msra.mxu0 0.0
        %1002 = vmatprep.subr.mxu0 0.0
        %1003 = vmatpush2.msra.mxu0 0.0
        %1004 = vmatprep.subr.mxu0 0.0
        %1005 = vmatpush2.msra.mxu0 0.0
        %1006 = vmatprep.subr.mxu0 0.0
        %1007 = vmatpush2.msra.mxu0 0.0
        %1008 = vmatprep.subr.mxu0 0.0
        %1009 = vmatpush2.msra.mxu0 0.0
        %1010 = vmatprep.subr.mxu0 0.0
        %1011 = vmatpush2.msra.mxu0 0.0
        %1012 = vmatprep.mubr.f32.mxu0 0.0
        %1013 = vmatmul.mubr.f32.gmra.mxu0 %v921
        %v1014 = vpop.f32.mrf.mxu0
        %v1015 = vadd.f32 %v946, %v1014
        %v1016 = vpop.f32.mrf.mxu0
        %1017 = vmatprep.mubr.f32.mxu0 0.0
        %1018 = vmatmul.mubr.f32.gmra.mxu0 %v922
        %v1019 = vpop.f32.mrf.mxu0
        %v1020 = vadd.f32 %v946, %v1019
        %v1021 = vpop.f32.mrf.mxu0
        %1022 = vdwg.mxu0
        %v1023 = vadd.f32 %v1015, %v666
        %v1024 = vadd.f32 %v1020, %v667
        %1025 = vst [vmem:[%s271] sm:$0xff] %v1023
        %1026 = vst [vmem:[%s271 + $0x8] sm:$0xff] %v1024
        %s1027 = sand.u32 %s141, 1
        %s1028 = scalar_lea.sflag [#allocation4], %s1027
        %s1029 = sand.u32 %s141, 1
        %s1030 = smul.addr %s1029, 16
        %s1031 = scalar_lea.vmem [#allocation8], %s1030
        // Predicated region
        $region53: #{tpu_custom_call.1} parent=39 // pred_check
          %p1032 = pneg %p151
        $region54: #{tpu_custom_call.1} parent=39 // pred_check_branch
          %1034 = sbr.rel (%p1032) target = $region56
        $region55: #{tpu_custom_call.1} parent=39 // pred_region
          %s1036 = ssub.s32 256, 256
          %1037 = vsyncadd %s1028, %s1036
          %s1038 = smul.addr %s23, 2
          %s1039 = smul.addr %s1038, 128
          %s1040 = scalar_lea.hbm %s5, %s1039
          %s1041 = sshll.u32 %s1031, 4
          %s1042 = int_to_ptr.vmem [resolvable:$true] %s1041
          %1047 = dma.vmem_to_hbm [thread:$0]  %s1042, 256, %s1040, %s1028, 128, 128, 8
        $region56: #{tpu_custom_call.1} parent=39 // pred_fallthru
          _
      $region40: #{tpu_custom_call.1} parent=5 // pred_fallthru
        _
      %p1048 = scmp.le.s32.totalorder 2, %s18
      // Predicated region
      $region57: #{tpu_custom_call.1} parent=5 // pred_check
        %p1049 = pneg %p1048
      $region58: #{tpu_custom_call.1} parent=5 // pred_check_branch
        %1051 = sbr.rel (%p1049) target = $region60
      $region59: #{tpu_custom_call.1} parent=5 // pred_region
        %s1052 = ssub.s32 %s18, 2
        // Predicated region
        $region61: #{tpu_custom_call.1} parent=59 // pred_check
          %p1053 = pneg %p157
        $region62: #{tpu_custom_call.1} parent=59 // pred_check_branch
          %1055 = sbr.rel (%p1053) target = $region64
        $region63: #{tpu_custom_call.1} parent=59 // pred_region
          %s1056 = sand.u32 %s142, 1
          %s1057 = scalar_lea.sflag [#allocation4], %s1056
          %s1058 = sand.u32 %s142, 1
          %s1059 = smul.addr %s1058, 16
          %s1060 = scalar_lea.vmem [#allocation8], %s1059
          %1061 = dma.done %s1057, 256
        $region64: #{tpu_custom_call.1} parent=59 // pred_fallthru
          _
      $region60: #{tpu_custom_call.1} parent=5 // pred_fallthru
        _
    $region6: #{tpu_custom_call.1} parent=1 // loop_footer
      %s22 = sadd.s32 1, %s18
    $region7: #{tpu_custom_call.1} parent=1 // loop_footer_branch
      %17 = sbr.rel target = $region3
    $region8: #{tpu_custom_call.1} parent=1 // loop_exit
      _
    %1062 = vsyncpa [#allocation3], 1
    %s1063 = scalar_lea.sflag [#allocation3], 1
    %1064 = vsyncpa %s1063, 1
    %1065 = vsyncpa [#allocation6], 1
    %1066 = vsyncpa [#allocation4], 1
    %s1067 = scalar_lea.sflag [#allocation4], 1
    %1068 = vsyncpa %s1067, 1

</llo_original>
